<compile_context>
chip_gen: v6e
topology: v6e:2x2x1
jax: 0.10.0
libtpu: 0.0.40
codegen_flags: <defaults>
</compile_context>

<pallas_src>
import functools

import jax
import jax.numpy as jnp
from jax.experimental import pallas as pl
from jax.experimental.pallas import tpu as pltpu

LN_EPS = 1e-5


def _round_up(x, m):
    return ((x + m - 1) // m) * m


def _encoder_kernel(x_ref, w1_ref, w2_ref, w3_ref, bpack_ref, b3_ref, o_ref):
    x = x_ref[...]

    # packed per-feature params: rows = [b1, b2, ln_gamma, ln_beta], each (1, hs)
    b1 = bpack_ref[0:1, :]
    b2 = bpack_ref[1:2, :]
    g = bpack_ref[2:3, :]
    beta = bpack_ref[3:4, :]

    # fc1 + ReLU
    h = jnp.dot(x, w1_ref[...], preferred_element_type=jnp.float32) + b1
    h = jnp.maximum(h, 0.0)

    # fc2
    h = jnp.dot(h, w2_ref[...], preferred_element_type=jnp.float32) + b2

    # LayerNorm over the hidden (last) dim -- biased variance, matches torch.
    mean = jnp.mean(h, axis=-1, keepdims=True)
    cent = h - mean
    var = jnp.mean(cent * cent, axis=-1, keepdims=True)
    h = cent * jax.lax.rsqrt(var + LN_EPS) * g + beta

    # ReLU + fc3 (narrow out_dim stores are fine: the kernel is HBM-bound, not
    # VMEM-store-slot bound, and unpadded output minimizes HBM write traffic).
    h = jnp.maximum(h, 0.0)
    out = jnp.dot(h, w3_ref[...], preferred_element_type=jnp.float32) + b3_ref[...]
    o_ref[...] = out.astype(o_ref.dtype)


def _choose_tile(batch, block_b):
    """Batch tile: multiple of 8 (or the whole batch), capped at block_b, with a
    step-count target that keeps both v7x TensorCores pipelined without splitting
    small batches on single-TC chips."""
    block_b = min(block_b, 8192)
    if batch >= 4096:
        min_steps = 4
    elif batch >= 2048:
        min_steps = 2
    else:
        min_steps = 1
    bb = min(block_b, pl.cdiv(batch, min_steps))
    bb = _round_up(max(bb, 8), 8)
    if bb >= batch:
        bb = batch  # single full-extent block (legal even if batch % 8 != 0)
    return bb


def _forward_jnp(x, params):
    """Pure-jnp forward; used as the small-batch fast path and as the reference."""
    w1, b1, w2, b2, g, beta, w3, b3 = params
    h = jnp.maximum(x @ w1 + b1, 0.0)
    h = h @ w2 + b2
    mean = jnp.mean(h, axis=-1, keepdims=True)
    var = jnp.mean((h - mean) ** 2, axis=-1, keepdims=True)
    h = (h - mean) / jnp.sqrt(var + LN_EPS) * g + beta
    h = jnp.maximum(h, 0.0)
    return h @ w3 + b3


@functools.partial(jax.jit, static_argnames=("block_b", "min_pallas_batch"))
def single_encoder_forward(x, params, *, block_b=4096, min_pallas_batch=512):
    """x: (B, 2*ns+na+1). Returns (B, out_dim)."""
    w1, b1, w2, b2, g, beta, w3, b3 = params
    B, in_dim = x.shape
    out_dim = w3.shape[1]

    if B < min_pallas_batch:
        # Small-batch fast path: kernel-launch / wrapper overhead dominates there.
        return _forward_jnp(x, params)

    bb = _choose_tile(B, block_b)
    grid = (pl.cdiv(B, bb),)  # partial last block handled by masked boundary stores

    # Pack the small per-feature vectors into one block: [b1; b2; gamma; beta].
    bpack = jnp.concatenate([b1, b2, g, beta], axis=0)  # (4, hs)

    # VMEM budget: double-buffered x/out tiles are lane-padded to 128 columns,
    # plus headroom for in-kernel f32 intermediates. Cap at 48 MiB (v7x-safe).
    lane = 128
    vmem_est = 10 * bb * lane * 4 + (1 << 20)
    vmem_limit = int(min(max(vmem_est, 16 << 20), 48 << 20))

    full = lambda shape: pl.BlockSpec(shape, lambda i: (0,) * len(shape))

    out = pl.pallas_call(
        _encoder_kernel,
        out_shape=jax.ShapeDtypeStruct((B, out_dim), jnp.float32),
        grid_spec=pltpu.PrefetchScalarGridSpec(
            num_scalar_prefetch=0,
            grid=grid,
            in_specs=[
                pl.BlockSpec((bb, in_dim), lambda i: (i, 0)),  # x (batch-tiled)
                full(w1.shape),                                # (in_dim, hs)
                full(w2.shape),                                # (hs, hs)
                full(w3.shape),                                # (hs, out_dim)
                full(bpack.shape),                             # (4, hs)
                full(b3.shape),                                # (1, out_dim)
            ],
            out_specs=pl.BlockSpec((bb, out_dim), lambda i: (i, 0)),
        ),
        compiler_params=pltpu.CompilerParams(
            dimension_semantics=("parallel",),
            vmem_limit_bytes=vmem_limit,
        ),
    )(x, w1, w2, w3, bpack, b3)

    return out


def init_params(key, ns, na, latent_dim, hs, cov_type="diag"):
    in_dim = 2 * ns + na + 1
    if cov_type == "diag":
        out_dim = 2 * latent_dim
    elif cov_type == "scalar":
        out_dim = latent_dim + 1
    elif cov_type == "fixed":
        out_dim = latent_dim
    else:
        raise ValueError("unsupported cov_type for this demo")
    k1, k2, k3 = jax.random.split(key, 3)
    scale = 0.1
    # weights stored (in, out); biases kept 2D (1, out) for TPU-friendly layout.
    w1 = scale * jax.random.normal(k1, (in_dim, hs), jnp.float32)
    b1 = jnp.zeros((1, hs), jnp.float32)
    w2 = scale * jax.random.normal(k2, (hs, hs), jnp.float32)
    b2 = jnp.zeros((1, hs), jnp.float32)
    g = jnp.ones((1, hs), jnp.float32)       # LayerNorm weight (torch default: ones)
    beta = jnp.zeros((1, hs), jnp.float32)   # LayerNorm bias  (torch default: zeros)
    w3 = scale * jax.random.normal(k3, (hs, out_dim), jnp.float32)
    b3 = jnp.zeros((1, out_dim), jnp.float32)
    return (w1, b1, w2, b2, g, beta, w3, b3)


if __name__ == "__main__":
    # TODO(synk): self.bn (BatchNorm1d) exists in the torch module but is unused
    # in forward(), so it is intentionally not implemented here.
    ns, na, latent_dim, hs = 4, 2, 3, 32   # small shapes; in_dim = 2*4+2+1 = 11
    in_dim = 2 * ns + na + 1
    out_dim = 2 * latent_dim

    key = jax.random.PRNGKey(0)
    kx, kp = jax.random.split(key)
    params = init_params(kp, ns, na, latent_dim, hs, cov_type="diag")

    # 1) Small batch forced through the Pallas path (single full-extent block).
    x_small = jax.random.normal(kx, (16, in_dim), jnp.float32)
    out_small = jax.block_until_ready(
        single_encoder_forward(x_small, params, min_pallas_batch=0))
    ref_small = _forward_jnp(x_small, params)
    assert out_small.shape == (16, out_dim), out_small.shape
    assert jnp.allclose(out_small, ref_small, atol=1e-4, rtol=1e-4), \
        float(jnp.max(jnp.abs(out_small - ref_small)))

    # 2) Ragged batch through the Pallas path: partial last block, masked boundary
    #    stores, no jnp.pad / slice around the kernel.
    x_ragged = jax.random.normal(kx, (1037, in_dim), jnp.float32)
    out_ragged = jax.block_until_ready(
        single_encoder_forward(x_ragged, params, block_b=256, min_pallas_batch=0))
    ref_ragged = _forward_jnp(x_ragged, params)
    assert out_ragged.shape == (1037, out_dim), out_ragged.shape
    assert jnp.allclose(out_ragged, ref_ragged, atol=1e-4, rtol=1e-4), \
        float(jnp.max(jnp.abs(out_ragged - ref_ragged)))

    # 3) Auto small-batch fast path (plain jnp, skips the kernel machinery).
    out_fast = jax.block_until_ready(single_encoder_forward(x_small, params))
    assert jnp.allclose(out_fast, ref_small, atol=1e-5, rtol=1e-5)

    print("KERNEL_OK")
</pallas_src>

<mosaic_0001>
module attributes {stable_mosaic.version = 11 : i64} {
  func.func @_encoder_kernel(%arg0: i32, %arg1: memref<16x11xf32, #tpu.memory_space<vmem>>, %arg2: memref<11x32xf32, #tpu.memory_space<vmem>>, %arg3: memref<32x32xf32, #tpu.memory_space<vmem>>, %arg4: memref<32x6xf32, #tpu.memory_space<vmem>>, %arg5: memref<4x32xf32, #tpu.memory_space<vmem>>, %arg6: memref<1x6xf32, #tpu.memory_space<vmem>>, %arg7: memref<16x6xf32, #tpu.memory_space<vmem>>) attributes {dimension_semantics = [#tpu.dimension_semantics<parallel>], iteration_bounds = array<i64: 1>, scalar_prefetch = 0 : i64, scratch_operands = 0 : i64, tpu.core_type = #tpu.core_type<tc>, window_params = [{transform_indices = @transform_0, window_bounds = array<i64: 16, 11>}, {pipeline_mode = #tpu.pipeline_mode<synchronous>, transform_indices = @transform_1, window_bounds = array<i64: 11, 32>}, {pipeline_mode = #tpu.pipeline_mode<synchronous>, transform_indices = @transform_2, window_bounds = array<i64: 32, 32>}, {pipeline_mode = #tpu.pipeline_mode<synchronous>, transform_indices = @transform_3, window_bounds = array<i64: 32, 6>}, {pipeline_mode = #tpu.pipeline_mode<synchronous>, transform_indices = @transform_4, window_bounds = array<i64: 4, 32>}, {pipeline_mode = #tpu.pipeline_mode<synchronous>, transform_indices = @transform_5, window_bounds = array<i64: 1, 6>}, {transform_indices = @transform_6, window_bounds = array<i64: 16, 6>}]} {
    %c0 = arith.constant 0 : index
    %c0_0 = arith.constant 0 : index
    %0 = vector.load %arg1[%c0, %c0_0] : memref<16x11xf32, #tpu.memory_space<vmem>>, vector<16x11xf32>
    %c0_1 = arith.constant 0 : index
    %c0_2 = arith.constant 0 : index
    %1 = vector.load %arg5[%c0_1, %c0_2] : memref<4x32xf32, #tpu.memory_space<vmem>>, vector<1x32xf32>
    %c1 = arith.constant 1 : index
    %c0_3 = arith.constant 0 : index
    %2 = vector.load %arg5[%c1, %c0_3] : memref<4x32xf32, #tpu.memory_space<vmem>>, vector<1x32xf32>
    %c2 = arith.constant 2 : index
    %c0_4 = arith.constant 0 : index
    %3 = vector.load %arg5[%c2, %c0_4] : memref<4x32xf32, #tpu.memory_space<vmem>>, vector<1x32xf32>
    %c3 = arith.constant 3 : index
    %c0_5 = arith.constant 0 : index
    %4 = vector.load %arg5[%c3, %c0_5] : memref<4x32xf32, #tpu.memory_space<vmem>>, vector<1x32xf32>
    %c0_6 = arith.constant 0 : index
    %c0_7 = arith.constant 0 : index
    %5 = vector.load %arg2[%c0_6, %c0_7] : memref<11x32xf32, #tpu.memory_space<vmem>>, vector<11x32xf32>
    %cst = arith.constant dense<0.000000e+00> : vector<16x32xf32>
    %6 = tpu.matmul %0, %5, %cst {dimension_numbers = #tpu.dot_dimension_numbers<[1], [0], [0], [1], [0, 0, 1, 1], [], []>} : vector<16x11xf32>, vector<11x32xf32>, vector<16x32xf32> -> vector<16x32xf32>
    %7 = vector.broadcast %1 : vector<1x32xf32> to vector<16x32xf32>
    %8 = arith.addf %6, %7 : vector<16x32xf32>
    %cst_8 = arith.constant 0.000000e+00 : f32
    %9 = vector.broadcast %cst_8 : f32 to vector<16x32xf32>
    %10 = arith.maximumf %8, %9 : vector<16x32xf32>
    %c0_9 = arith.constant 0 : index
    %c0_10 = arith.constant 0 : index
    %11 = vector.load %arg3[%c0_9, %c0_10] : memref<32x32xf32, #tpu.memory_space<vmem>>, vector<32x32xf32>
    %cst_11 = arith.constant dense<0.000000e+00> : vector<16x32xf32>
    %12 = tpu.matmul %10, %11, %cst_11 {dimension_numbers = #tpu.dot_dimension_numbers<[1], [0], [0], [1], [0, 0, 1, 1], [], []>} : vector<16x32xf32>, vector<32x32xf32>, vector<16x32xf32> -> vector<16x32xf32>
    %13 = vector.broadcast %2 : vector<1x32xf32> to vector<16x32xf32>
    %14 = arith.addf %12, %13 : vector<16x32xf32>
    %cst_12 = arith.constant dense<0.000000e+00> : vector<16xf32>
    %15 = vector.multi_reduction <add>, %14, %cst_12 [1] : vector<16x32xf32> to vector<16xf32>
    %16 = vector.shape_cast %15 : vector<16xf32> to vector<16x1xf32>
    %cst_13 = arith.constant 3.200000e+01 : f32
    %17 = vector.broadcast %cst_13 : f32 to vector<16x1xf32>
    %18 = arith.divf %16, %17 : vector<16x1xf32>
    %19 = vector.broadcast %18 : vector<16x1xf32> to vector<16x32xf32>
    %20 = arith.subf %14, %19 : vector<16x32xf32>
    %21 = arith.mulf %20, %20 : vector<16x32xf32>
    %cst_14 = arith.constant dense<0.000000e+00> : vector<16xf32>
    %22 = vector.multi_reduction <add>, %21, %cst_14 [1] : vector<16x32xf32> to vector<16xf32>
    %23 = vector.shape_cast %22 : vector<16xf32> to vector<16x1xf32>
    %cst_15 = arith.constant 3.200000e+01 : f32
    %24 = vector.broadcast %cst_15 : f32 to vector<16x1xf32>
    %25 = arith.divf %23, %24 : vector<16x1xf32>
    %cst_16 = arith.constant 9.99999974E-6 : f32
    %26 = vector.broadcast %cst_16 : f32 to vector<16x1xf32>
    %27 = arith.addf %25, %26 : vector<16x1xf32>
    %28 = math.rsqrt %27 : vector<16x1xf32>
    %29 = vector.broadcast %28 : vector<16x1xf32> to vector<16x32xf32>
    %30 = arith.mulf %20, %29 : vector<16x32xf32>
    %31 = vector.broadcast %3 : vector<1x32xf32> to vector<16x32xf32>
    %32 = arith.mulf %30, %31 : vector<16x32xf32>
    %33 = vector.broadcast %4 : vector<1x32xf32> to vector<16x32xf32>
    %34 = arith.addf %32, %33 : vector<16x32xf32>
    %cst_17 = arith.constant 0.000000e+00 : f32
    %35 = vector.broadcast %cst_17 : f32 to vector<16x32xf32>
    %36 = arith.maximumf %34, %35 : vector<16x32xf32>
    %c0_18 = arith.constant 0 : index
    %c0_19 = arith.constant 0 : index
    %37 = vector.load %arg4[%c0_18, %c0_19] : memref<32x6xf32, #tpu.memory_space<vmem>>, vector<32x6xf32>
    %cst_20 = arith.constant dense<0.000000e+00> : vector<16x6xf32>
    %38 = tpu.matmul %36, %37, %cst_20 {dimension_numbers = #tpu.dot_dimension_numbers<[1], [0], [0], [1], [0, 0, 1, 1], [], []>} : vector<16x32xf32>, vector<32x6xf32>, vector<16x6xf32> -> vector<16x6xf32>
    %c0_21 = arith.constant 0 : index
    %c0_22 = arith.constant 0 : index
    %39 = vector.load %arg6[%c0_21, %c0_22] : memref<1x6xf32, #tpu.memory_space<vmem>>, vector<1x6xf32>
    %40 = vector.broadcast %39 : vector<1x6xf32> to vector<16x6xf32>
    %41 = arith.addf %38, %40 : vector<16x6xf32>
    %c0_23 = arith.constant 0 : index
    %c0_24 = arith.constant 0 : index
    %42 = vector.load %arg7[%c0_23, %c0_24] : memref<16x6xf32, #tpu.memory_space<vmem>>, vector<16x6xf32>
    tpu.vector_store %arg7[%c0_23, %c0_24], %41 {strides = array<i32>} : memref<16x6xf32, #tpu.memory_space<vmem>>, vector<16x6xf32>,
    return
  }
  func.func @transform_0(%arg0: i32) -> (i32, i32) {
    %c0_i32 = arith.constant 0 : i32
    %c0_i32_0 = arith.constant 0 : i32
    return %arg0, %c0_i32 : i32, i32
  }
  func.func @transform_1(%arg0: i32) -> (i32, i32) {
    %c0_i32 = arith.constant 0 : i32
    %c0_i32_0 = arith.constant 0 : i32
    %c0_i32_1 = arith.constant 0 : i32
    return %c0_i32, %c0_i32_0 : i32, i32
  }
  func.func @transform_2(%arg0: i32) -> (i32, i32) {
    %c0_i32 = arith.constant 0 : i32
    %c0_i32_0 = arith.constant 0 : i32
    %c0_i32_1 = arith.constant 0 : i32
    return %c0_i32, %c0_i32_0 : i32, i32
  }
  func.func @transform_3(%arg0: i32) -> (i32, i32) {
    %c0_i32 = arith.constant 0 : i32
    %c0_i32_0 = arith.constant 0 : i32
    %c0_i32_1 = arith.constant 0 : i32
    return %c0_i32, %c0_i32_0 : i32, i32
  }
  func.func @transform_4(%arg0: i32) -> (i32, i32) {
    %c0_i32 = arith.constant 0 : i32
    %c0_i32_0 = arith.constant 0 : i32
    %c0_i32_1 = arith.constant 0 : i32
    return %c0_i32, %c0_i32_0 : i32, i32
  }
  func.func @transform_5(%arg0: i32) -> (i32, i32) {
    %c0_i32 = arith.constant 0 : i32
    %c0_i32_0 = arith.constant 0 : i32
    %c0_i32_1 = arith.constant 0 : i32
    return %c0_i32, %c0_i32_0 : i32, i32
  }
  func.func @transform_6(%arg0: i32) -> (i32, i32) {
    %c0_i32 = arith.constant 0 : i32
    %c0_i32_0 = arith.constant 0 : i32
    return %arg0, %c0_i32 : i32, i32
  }
}

</mosaic_0001>

<llo_original>
// kernel: single_encoder_forward.1
$region0: #{single_encoder_forward.1}
  #allocation0 [shape = 'u32[]', space=smem, size = 0x4, offset = 0x4, fixed_abs, tag = 'smem constant byte address 0x4 - core index']
  #allocation1 [shape = 'u32[144,128]{1,0:T(1,128)}', space=vmem, size = 0x12000, scoped, tag = 'internal scratch']
  %s0 = inlined_call_operand.vmem [shape: f32[16,11], index: 0, kind: input, shape index: {}]
  %s1 = inlined_call_operand.hbm [shape: f32[11,32], index: 1, kind: input, shape index: {}]
  %s2 = inlined_call_operand.vmem [shape: f32[32,32], index: 2, kind: input, shape index: {}]
  %s3 = inlined_call_operand.vmem [shape: f32[32,6], index: 3, kind: input, shape index: {}]
  %s4 = inlined_call_operand.vmem [shape: f32[4,32], index: 4, kind: input, shape index: {}]
  %s5 = inlined_call_operand.vmem [shape: f32[1,6], index: 5, kind: input, shape index: {}]
  %s6 = inlined_call_operand.vmem [shape: f32[16,6], index: 6, kind: output, shape index: {}]
  %s7 = sld [smem:[#allocation0]]
  $region38: #{single_encoder_forward.1} parent=0
    _
  %s9 = ssub.s32 1, %s7
  %s10 = scalar_select 0, %s9, %s7
  $region1: #{single_encoder_forward.1} parent=0
    #allocation2 [shape = 'u8[8192]{0}', space=vmem, size = 0x2000, scoped, tag = 'input window, operand 1, single buffered']
    #allocation3 [shape = 's32[1]{0}', space=sflag, size = 0x4, scoped, tag = 'scoped memory for single_encoder_forward.1']
    %11 = vsyncpa [#allocation3], 0
    // Predicated region
    $region2: #{single_encoder_forward.1} parent=1 // pred_check
      _
    $region3: #{single_encoder_forward.1} parent=1 // pred_check_branch
      %13 = sbr.rel (0) target = $region5
    $region4: #{single_encoder_forward.1} parent=1 // pred_region
      _
    $region5: #{single_encoder_forward.1} parent=1 // pred_fallthru
      _
    // Predicated region
    $region6: #{single_encoder_forward.1} parent=1 // pred_check
      _
    $region7: #{single_encoder_forward.1} parent=1 // pred_check_branch
      %15 = sbr.rel (0) target = $region9
    $region8: #{single_encoder_forward.1} parent=1 // pred_region
      %s17 = ssub.s32 256, 256
      %18 = vsyncadd [#allocation3], %s17
      %s19 = sshll.u32 [#allocation2], 4
      %s20 = int_to_ptr.vmem [resolvable:$true] %s19
      %25 = dma.hbm_to_vmem [thread:$0]  %s1, 256, %s20, [#allocation3], 128, 128, 8
    $region9: #{single_encoder_forward.1} parent=1 // pred_fallthru
      _
    // Predicated region
    $region10: #{single_encoder_forward.1} parent=1 // pred_check
      _
    $region11: #{single_encoder_forward.1} parent=1 // pred_check_branch
      %27 = sbr.rel (0) target = $region13
    $region12: #{single_encoder_forward.1} parent=1 // pred_region
      _
    $region13: #{single_encoder_forward.1} parent=1 // pred_fallthru
      _
    // Predicated region
    $region14: #{single_encoder_forward.1} parent=1 // pred_check
      _
    $region15: #{single_encoder_forward.1} parent=1 // pred_check_branch
      %29 = sbr.rel (0) target = $region17
    $region16: #{single_encoder_forward.1} parent=1 // pred_region
      _
    $region17: #{single_encoder_forward.1} parent=1 // pred_fallthru
      _
    // Predicated region
    $region18: #{single_encoder_forward.1} parent=1 // pred_check
      _
    $region19: #{single_encoder_forward.1} parent=1 // pred_check_branch
      %31 = sbr.rel (0) target = $region21
    $region20: #{single_encoder_forward.1} parent=1 // pred_region
      _
    $region21: #{single_encoder_forward.1} parent=1 // pred_fallthru
      _
    // Predicated region
    $region22: #{single_encoder_forward.1} parent=1 // pred_check
      _
    $region23: #{single_encoder_forward.1} parent=1 // pred_check_branch
      %33 = sbr.rel (0) target = $region25
    $region24: #{single_encoder_forward.1} parent=1 // pred_region
      _
    $region25: #{single_encoder_forward.1} parent=1 // pred_fallthru
      _
    // Predicated region
    $region26: #{single_encoder_forward.1} parent=1 // pred_check
      _
    $region27: #{single_encoder_forward.1} parent=1 // pred_check_branch
      %35 = sbr.rel (0) target = $region29
    $region28: #{single_encoder_forward.1} parent=1 // pred_region
      %36 = dma.done [#allocation3], 256
    $region29: #{single_encoder_forward.1} parent=1 // pred_fallthru
      _
    %v37 = vld [vmem:[%s0] sm:$0xff]
    %v38 = vld [vmem:[%s0 + $0x8] sm:$0xff]
    %v39 = vld [vmem:[%s4] sm:$0x1]
    %v40 = vld [vmem:[%s4 + $0x1] sm:$0x1]
    %v41 = vld [vmem:[%s4 + $0x2] sm:$0x1]
    %v42 = vld [vmem:[%s4 + $0x3] sm:$0x1]
    %v43 = vld [vmem:[#allocation2] sm:$0xff]
    %v44 = vld [vmem:[#allocation2 + $0x8] sm:$0x7]
    %v45 = vlaneseq
    %v46 = vshrl.u32 %v45, 7
    %v47 = vsub.s32 0, %v46
    %v48 = vrot.slane %v39, %v47
    %vm49 = vcmask 89088
    %v51 = vsel %vm49, %v37, 0
    %v54 = vsel %vm49, %v38, 0
    %vm56 = vcmask 1042432
    %v58 = vsel %vm56, %v44, 0
    %60 = vmatprep.subr.mxu0 0.0
    %61 = vmatpush1.msra.mxu0 0.0
    %62 = vmatprep.subr.mxu0 0.0
    %63 = vmatpush1.msra.mxu0 0.0
    %64 = vmatprep.subr.mxu0 0.0
    %65 = vmatpush1.msra.mxu0 0.0
    %66 = vmatprep.subr.mxu0 0.0
    %67 = vmatpush1.msra.mxu0 0.0
    %68 = vmatprep.subr.mxu0 0.0
    %69 = vmatpush1.msra.mxu0 0.0
    %70 = vmatprep.subr.mxu0 0.0
    %71 = vmatpush1.msra.mxu0 0.0
    %72 = vmatprep.subr.mxu0 0.0
    %73 = vmatpush1.msra.mxu0 0.0
    %74 = vmatprep.subr.mxu0 0.0
    %75 = vmatpush1.msra.mxu0 0.0
    %76 = vmatprep.subr.mxu0 0.0
    %77 = vmatpush1.msra.mxu0 0.0
    %78 = vmatprep.subr.mxu0 0.0
    %79 = vmatpush1.msra.mxu0 0.0
    %80 = vmatprep.subr.mxu0 0.0
    %81 = vmatpush1.msra.mxu0 0.0
    %82 = vmatprep.subr.mxu0 0.0
    %83 = vmatpush1.msra.mxu0 0.0
    %84 = vmatprep.subr.mxu0 0.0
    %85 = vmatpush1.msra.mxu0 0.0
    %86 = vmatprep.subr.mxu0 0.0
    %87 = vmatpush1.msra.mxu0 0.0
    %88 = vmatprep.subr.mxu0 0.0
    %89 = vmatpush1.msra.mxu0 %v58
    %90 = vmatprep.subr.mxu0 0.0
    %91 = vmatpush1.msra.mxu0 %v43
    %92 = vmatprep.subr.mxu0 0.0
    %93 = vmatpush2.msra.mxu0 0.0
    %94 = vmatprep.subr.mxu0 0.0
    %95 = vmatpush2.msra.mxu0 0.0
    %96 = vmatprep.subr.mxu0 0.0
    %97 = vmatpush2.msra.mxu0 0.0
    %98 = vmatprep.subr.mxu0 0.0
    %99 = vmatpush2.msra.mxu0 0.0
    %100 = vmatprep.subr.mxu0 0.0
    %101 = vmatpush2.msra.mxu0 0.0
    %102 = vmatprep.subr.mxu0 0.0
    %103 = vmatpush2.msra.mxu0 0.0
    %104 = vmatprep.subr.mxu0 0.0
    %105 = vmatpush2.msra.mxu0 0.0
    %106 = vmatprep.subr.mxu0 0.0
    %107 = vmatpush2.msra.mxu0 0.0
    %108 = vmatprep.subr.mxu0 0.0
    %109 = vmatpush2.msra.mxu0 0.0
    %110 = vmatprep.subr.mxu0 0.0
    %111 = vmatpush2.msra.mxu0 0.0
    %112 = vmatprep.subr.mxu0 0.0
    %113 = vmatpush2.msra.mxu0 0.0
    %114 = vmatprep.subr.mxu0 0.0
    %115 = vmatpush2.msra.mxu0 0.0
    %116 = vmatprep.subr.mxu0 0.0
    %117 = vmatpush2.msra.mxu0 0.0
    %118 = vmatprep.subr.mxu0 0.0
    %119 = vmatpush2.msra.mxu0 0.0
    %120 = vmatprep.subr.mxu0 0.0
    %121 = vmatpush2.msra.mxu0 0.0
    %122 = vmatprep.subr.mxu0 0.0
    %123 = vmatpush2.msra.mxu0 0.0
    %124 = vmatprep.mubr.f32.mxu0 0.0
    %125 = vmatmul.mubr.f32.gmra.mxu0 %v51
    %v126 = vpop.f32.mrf.mxu0
    %v127 = vadd.f32 %v48, %v126
    %v128 = vpop.f32.mrf.mxu0
    %129 = vmatprep.mubr.f32.mxu0 0.0
    %130 = vmatmul.mubr.f32.gmra.mxu0 %v54
    %v131 = vpop.f32.mrf.mxu0
    %v132 = vadd.f32 %v48, %v131
    %v133 = vpop.f32.mrf.mxu0
    %134 = vdwg.mxu0
    %v135 = vmax.f32 %v127, 0.0
    %v136 = vmax.f32 %v132, 0.0
    %v137 = vld [vmem:[%s2] sm:$0xff]
    %v138 = vld [vmem:[%s2 + $0x8] sm:$0xff]
    %v139 = vld [vmem:[%s2 + $0x10] sm:$0xff]
    %v140 = vld [vmem:[%s2 + $0x18] sm:$0xff]
    %v141 = vlaneseq
    %v142 = vshrl.u32 %v141, 7
    %v143 = vsub.s32 0, %v142
    %v144 = vrot.slane %v40, %v143
    %vm145 = vcmask 261120
    %v147 = vsel %vm145, %v135, 0
    %v150 = vsel %vm145, %v136, 0
    %152 = vmatprep.subr.mxu0 0.0
    %153 = vmatpush1.msra.mxu0 0.0
    %154 = vmatprep.subr.mxu0 0.0
    %155 = vmatpush1.msra.mxu0 0.0
    %156 = vmatprep.subr.mxu0 0.0
    %157 = vmatpush1.msra.mxu0 0.0
    %158 = vmatprep.subr.mxu0 0.0
    %159 = vmatpush1.msra.mxu0 0.0
    %160 = vmatprep.subr.mxu0 0.0
    %161 = vmatpush1.msra.mxu0 0.0
    %162 = vmatprep.subr.mxu0 0.0
    %163 = vmatpush1.msra.mxu0 0.0
    %164 = vmatprep.subr.mxu0 0.0
    %165 = vmatpush1.msra.mxu0 0.0
    %166 = vmatprep.subr.mxu0 0.0
    %167 = vmatpush1.msra.mxu0 0.0
    %168 = vmatprep.subr.mxu0 0.0
    %169 = vmatpush1.msra.mxu0 0.0
    %170 = vmatprep.subr.mxu0 0.0
    %171 = vmatpush1.msra.mxu0 0.0
    %172 = vmatprep.subr.mxu0 0.0
    %173 = vmatpush1.msra.mxu0 0.0
    %174 = vmatprep.subr.mxu0 0.0
    %175 = vmatpush1.msra.mxu0 0.0
    %176 = vmatprep.subr.mxu0 0.0
    %177 = vmatpush1.msra.mxu0 %v140
    %178 = vmatprep.subr.mxu0 0.0
    %179 = vmatpush1.msra.mxu0 %v139
    %180 = vmatprep.subr.mxu0 0.0
    %181 = vmatpush1.msra.mxu0 %v138
    %182 = vmatprep.subr.mxu0 0.0
    %183 = vmatpush1.msra.mxu0 %v137
    %184 = vmatprep.subr.mxu0 0.0
    %185 = vmatpush2.msra.mxu0 0.0
    %186 = vmatprep.subr.mxu0 0.0
    %187 = vmatpush2.msra.mxu0 0.0
    %188 = vmatprep.subr.mxu0 0.0
    %189 = vmatpush2.msra.mxu0 0.0
    %190 = vmatprep.subr.mxu0 0.0
    %191 = vmatpush2.msra.mxu0 0.0
    %192 = vmatprep.subr.mxu0 0.0
    %193 = vmatpush2.msra.mxu0 0.0
    %194 = vmatprep.subr.mxu0 0.0
    %195 = vmatpush2.msra.mxu0 0.0
    %196 = vmatprep.subr.mxu0 0.0
    %197 = vmatpush2.msra.mxu0 0.0
    %198 = vmatprep.subr.mxu0 0.0
    %199 = vmatpush2.msra.mxu0 0.0
    %200 = vmatprep.subr.mxu0 0.0
    %201 = vmatpush2.msra.mxu0 0.0
    %202 = vmatprep.subr.mxu0 0.0
    %203 = vmatpush2.msra.mxu0 0.0
    %204 = vmatprep.subr.mxu0 0.0
    %205 = vmatpush2.msra.mxu0 0.0
    %206 = vmatprep.subr.mxu0 0.0
    %207 = vmatpush2.msra.mxu0 0.0
    %208 = vmatprep.subr.mxu0 0.0
    %209 = vmatpush2.msra.mxu0 0.0
    %210 = vmatprep.subr.mxu0 0.0
    %211 = vmatpush2.msra.mxu0 0.0
    %212 = vmatprep.subr.mxu0 0.0
    %213 = vmatpush2.msra.mxu0 0.0
    %214 = vmatprep.subr.mxu0 0.0
    %215 = vmatpush2.msra.mxu0 0.0
    %216 = vmatprep.mubr.f32.mxu0 0.0
    %217 = vmatmul.mubr.f32.gmra.mxu0 %v147
    %v218 = vpop.f32.mrf.mxu0
    %v219 = vadd.f32 %v144, %v218
    %v220 = vpop.f32.mrf.mxu0
    %221 = vmatprep.mubr.f32.mxu0 0.0
    %222 = vmatmul.mubr.f32.gmra.mxu0 %v150
    %v223 = vpop.f32.mrf.mxu0
    %v224 = vadd.f32 %v144, %v223
    %v225 = vpop.f32.mrf.mxu0
    %226 = vdwg.mxu0
    %v227 = vsel %vm145, %v219, 0.0
    %228 = vadd.xlane.f32.xlu0 %v227
    %v229 = vpop.xlane.xlu0 %228
    %v230 = vsel %vm145, %v224, 0.0
    %231 = vadd.xlane.f32.xlu0 %v230
    %v232 = vpop.xlane.xlu0 %231
    %v233 = vrcp.pop 32.0
    %v234 = vmul.f32 %v229, %v233
    %v235 = vmul.f32 %v232, %v233
    %v236 = vsub.f32 %v219, %v234
    %v237 = vsub.f32 %v224, %v235
    %v238 = vmul.f32 %v236, %v236
    %v239 = vmul.f32 %v237, %v237
    %v240 = vsel %vm145, %v238, 0.0
    %241 = vadd.xlane.f32.xlu0 %v240
    %v242 = vpop.xlane.xlu0 %241
    %v243 = vsel %vm145, %v239, 0.0
    %244 = vadd.xlane.f32.xlu0 %v243
    %v245 = vpop.xlane.xlu0 %244
    %v246 = vmul.f32 %v242, %v233
    %v247 = vmul.f32 %v245, %v233
    %v248 = vadd.f32 %v246, 1e-05
    %v249 = vadd.f32 %v247, 1e-05
    %v250 = vrsqrt.pop %v248
    %v251 = vrsqrt.pop %v249
    %v252 = vmul.f32 %v236, %v250
    %v253 = vmul.f32 %v237, %v251
    %v254 = vlaneseq
    %v255 = vshrl.u32 %v254, 7
    %v256 = vsub.s32 0, %v255
    %v257 = vrot.slane %v41, %v256
    %v258 = vmul.f32 %v252, %v257
    %v259 = vmul.f32 %v253, %v257
    %v260 = vlaneseq
    %v261 = vshrl.u32 %v260, 7
    %v262 = vsub.s32 0, %v261
    %v263 = vrot.slane %v42, %v262
    %v264 = vadd.f32 %v258, %v263
    %v265 = vadd.f32 %v259, %v263
    %v266 = vmax.f32 %v264, 0.0
    %v267 = vmax.f32 %v265, 0.0
    %v268 = vld [vmem:[%s3] sm:$0xff]
    %v269 = vld [vmem:[%s3 + $0x8] sm:$0xff]
    %v270 = vld [vmem:[%s3 + $0x10] sm:$0xff]
    %v271 = vld [vmem:[%s3 + $0x18] sm:$0xff]
    %v272 = vld [vmem:[%s5] sm:$0x1]
    %v274 = vlaneseq
    %v275 = vshrl.u32 %v274, 7
    %v276 = vsub.s32 0, %v275
    %v277 = vrot.slane %v272, %v276
    %v280 = vsel %vm145, %v266, 0
    %v283 = vsel %vm145, %v267, 0
    %285 = vmatprep.subr.mxu0 0.0
    %286 = vmatpush1.msra.mxu0 0.0
    %287 = vmatprep.subr.mxu0 0.0
    %288 = vmatpush1.msra.mxu0 0.0
    %289 = vmatprep.subr.mxu0 0.0
    %290 = vmatpush1.msra.mxu0 0.0
    %291 = vmatprep.subr.mxu0 0.0
    %292 = vmatpush1.msra.mxu0 0.0
    %293 = vmatprep.subr.mxu0 0.0
    %294 = vmatpush1.msra.mxu0 0.0
    %295 = vmatprep.subr.mxu0 0.0
    %296 = vmatpush1.msra.mxu0 0.0
    %297 = vmatprep.subr.mxu0 0.0
    %298 = vmatpush1.msra.mxu0 0.0
    %299 = vmatprep.subr.mxu0 0.0
    %300 = vmatpush1.msra.mxu0 0.0
    %301 = vmatprep.subr.mxu0 0.0
    %302 = vmatpush1.msra.mxu0 0.0
    %303 = vmatprep.subr.mxu0 0.0
    %304 = vmatpush1.msra.mxu0 0.0
    %305 = vmatprep.subr.mxu0 0.0
    %306 = vmatpush1.msra.mxu0 0.0
    %307 = vmatprep.subr.mxu0 0.0
    %308 = vmatpush1.msra.mxu0 0.0
    %309 = vmatprep.subr.mxu0 0.0
    %310 = vmatpush1.msra.mxu0 %v271
    %311 = vmatprep.subr.mxu0 0.0
    %312 = vmatpush1.msra.mxu0 %v270
    %313 = vmatprep.subr.mxu0 0.0
    %314 = vmatpush1.msra.mxu0 %v269
    %315 = vmatprep.subr.mxu0 0.0
    %316 = vmatpush1.msra.mxu0 %v268
    %317 = vmatprep.subr.mxu0 0.0
    %318 = vmatpush2.msra.mxu0 0.0
    %319 = vmatprep.subr.mxu0 0.0
    %320 = vmatpush2.msra.mxu0 0.0
    %321 = vmatprep.subr.mxu0 0.0
    %322 = vmatpush2.msra.mxu0 0.0
    %323 = vmatprep.subr.mxu0 0.0
    %324 = vmatpush2.msra.mxu0 0.0
    %325 = vmatprep.subr.mxu0 0.0
    %326 = vmatpush2.msra.mxu0 0.0
    %327 = vmatprep.subr.mxu0 0.0
    %328 = vmatpush2.msra.mxu0 0.0
    %329 = vmatprep.subr.mxu0 0.0
    %330 = vmatpush2.msra.mxu0 0.0
    %331 = vmatprep.subr.mxu0 0.0
    %332 = vmatpush2.msra.mxu0 0.0
    %333 = vmatprep.subr.mxu0 0.0
    %334 = vmatpush2.msra.mxu0 0.0
    %335 = vmatprep.subr.mxu0 0.0
    %336 = vmatpush2.msra.mxu0 0.0
    %337 = vmatprep.subr.mxu0 0.0
    %338 = vmatpush2.msra.mxu0 0.0
    %339 = vmatprep.subr.mxu0 0.0
    %340 = vmatpush2.msra.mxu0 0.0
    %341 = vmatprep.subr.mxu0 0.0
    %342 = vmatpush2.msra.mxu0 0.0
    %343 = vmatprep.subr.mxu0 0.0
    %344 = vmatpush2.msra.mxu0 0.0
    %345 = vmatprep.subr.mxu0 0.0
    %346 = vmatpush2.msra.mxu0 0.0
    %347 = vmatprep.subr.mxu0 0.0
    %348 = vmatpush2.msra.mxu0 0.0
    %349 = vmatprep.mubr.f32.mxu0 0.0
    %350 = vmatmul.mubr.f32.gmra.mxu0 %v280
    %v351 = vpop.f32.mrf.mxu0
    %v352 = vadd.f32 %v277, %v351
    %v353 = vpop.f32.mrf.mxu0
    %354 = vmatprep.mubr.f32.mxu0 0.0
    %355 = vmatmul.mubr.f32.gmra.mxu0 %v283
    %v356 = vpop.f32.mrf.mxu0
    %v357 = vadd.f32 %v277, %v356
    %v358 = vpop.f32.mrf.mxu0
    %359 = vdwg.mxu0
    %vm360 = vcmask 48128
    %361 = vst.msk [vmem:[%s6] sm:$0xff] %vm360, %v352
    %362 = vst.msk [vmem:[%s6 + $0x8] sm:$0xff] %vm360, %v357
    // Predicated region
    $region30: #{single_encoder_forward.1} parent=1 // pred_check
      _
    $region31: #{single_encoder_forward.1} parent=1 // pred_check_branch
      %364 = sbr.rel (0) target = $region33
    $region32: #{single_encoder_forward.1} parent=1 // pred_region
      _
    $region33: #{single_encoder_forward.1} parent=1 // pred_fallthru
      _
    // Predicated region
    $region34: #{single_encoder_forward.1} parent=1 // pred_check
      _
    $region35: #{single_encoder_forward.1} parent=1 // pred_check_branch
      %366 = sbr.rel (0) target = $region37
    $region36: #{single_encoder_forward.1} parent=1 // pred_region
      _
    $region37: #{single_encoder_forward.1} parent=1 // pred_fallthru
      _
    %367 = vsyncpa [#allocation3], 1

</llo_original>
